<compile_context>
chip_gen: v5e
topology: v5e:2x2
jax: 0.10.0
libtpu: 0.0.40
codegen_flags: <defaults>
</compile_context>

<pallas_src>
import jax
import jax.numpy as jnp
from jax import lax
from jax.experimental import pallas as pl
from jax.experimental.pallas import tpu as pltpu

EPS = 1e-5              # RevIN eps
VMEM_BUDGET = 8 << 20   # conservative live-block budget (fits v7x's 32 MiB scoped default)
MIN_GRID_STEPS = 4      # give the software pipeline something to prefetch into
MAX_TB = 16             # cap on statically-unrolled per-row matmuls in the kernel


def _make_kernel(matmul_dtype):
    def kernel(x_ref, w_ref, aw_ref, iaw_ref, b2_ref, o_ref):
        # x_ref  : (TB, S, C)  batch tile of the raw input (native layout, no repack)
        # w_ref  : (P, S)      Net linear weight (resident across the grid)
        # aw_ref : (1, C)      RevIN affine weight
        # iaw_ref: (1, C)      1 / (affine_weight + eps^2)            (precomputed)
        # b2_ref : (P, C)      bias + (rowsum(W) - 1) * affine_bias   (precomputed)
        # o_ref  : (TB, P, C)  output tile
        x = x_ref[...].astype(jnp.float32)

        # ---- RevIN 'norm' statistics along time (biased var, centered-d reuse) ----
        mean = jnp.mean(x, axis=1, keepdims=True)               # (TB, 1, C)
        d = x - mean
        var = jnp.mean(d * d, axis=1, keepdims=True)            # unbiased=False
        inv_std = lax.rsqrt(var + EPS)                          # EUP, no VPU div/sqrt
        stdev = (var + EPS) * inv_std                           # == sqrt(var + EPS)

        scale_in = inv_std * aw_ref[...]                        # (TB, 1, C)
        xn = (d * scale_in).astype(matmul_dtype)                # single slab pass
        scale_out = stdev * iaw_ref[...]                        # (TB, 1, C)

        w = w_ref[...].astype(matmul_dtype)
        b2 = b2_ref[...]

        tb = x.shape[0]
        for b in range(tb):                                     # static unroll
            # seq_len -> pred_len time projection for one batch row (MXU)
            yb = jnp.dot(w, xn[b], preferred_element_type=jnp.float32)   # (P, C)
            # folded RevIN 'denorm': one add + one scale/offset pass
            o_ref[b] = ((yb + b2) * scale_out[b] + mean[b]).astype(o_ref.dtype)

    return kernel


def _pick_tb(B, S, C, P, itemsize=4):
    """Largest batch tile that divides B and keeps double-buffered blocks under
    the VMEM budget, preferring >= MIN_GRID_STEPS grid steps for pipelining."""
    def live_bytes(tb):
        x_blk = tb * S * C * itemsize
        o_blk = tb * P * C * itemsize
        # 2x pipeline double-buffering of in/out blocks + ~2 full-slab temps (d, xn)
        return 2 * (x_blk + o_blk) + 2 * x_blk

    divisors = [d for d in range(1, min(B, MAX_TB) + 1) if B % d == 0]
    fitting = [d for d in divisors if live_bytes(d) <= VMEM_BUDGET] or [1]
    tb = max(fitting)
    for d in sorted(fitting, reverse=True):
        if B // d >= MIN_GRID_STEPS:
            tb = d
            break
    return tb


def mfenet_forward(x, w, lin_bias, aff_w, aff_b, matmul_dtype=jnp.float32):
    """x: [B, seq_len, c_in] -> [B, pred_len, c_in]  (RevIN + Linear(seq->pred))."""
    B, S, C = x.shape
    P = w.shape[0]

    # ---- tiny wrapper-side precomputes (no passes over x or y) ----
    aw = aff_w.reshape(1, C).astype(jnp.float32)
    ab = aff_b.reshape(1, C).astype(jnp.float32)
    iaw = 1.0 / (aw + EPS * EPS)                                   # denorm reciprocal
    rw = jnp.sum(w.astype(jnp.float32), axis=1, keepdims=True)     # (P, 1) rowsum(W)
    b2 = lin_bias.reshape(P, 1).astype(jnp.float32) + (rw - 1.0) * ab   # (P, C)

    TB = _pick_tb(B, S, C, P, itemsize=x.dtype.itemsize)
    grid = (B // TB,)

    return pl.pallas_call(
        _make_kernel(matmul_dtype),
        out_shape=jax.ShapeDtypeStruct((B, P, C), x.dtype),
        grid_spec=pltpu.PrefetchScalarGridSpec(
            num_scalar_prefetch=0,
            grid=grid,
            in_specs=[
                pl.BlockSpec((TB, S, C), lambda i: (i, 0, 0)),   # x batch tile
                pl.BlockSpec((P, S), lambda i: (0, 0)),          # Net weight (resident)
                pl.BlockSpec((1, C), lambda i: (0, 0)),          # RevIN affine weight
                pl.BlockSpec((1, C), lambda i: (0, 0)),          # 1/(aw + eps^2)
                pl.BlockSpec((P, C), lambda i: (0, 0)),          # folded bias term
            ],
            out_specs=pl.BlockSpec((TB, P, C), lambda i: (i, 0, 0)),
        ),
        compiler_params=pltpu.CompilerParams(
            dimension_semantics=("parallel",),
        ),
    )(x, w, aw, iaw, b2)


def reference_forward(x, w, lin_bias, aff_w, aff_b):
    """Pure-JAX reference of the original module semantics (RevIN + linear Net)."""
    mean = jnp.mean(x, axis=1, keepdims=True)
    var = jnp.var(x, axis=1, keepdims=True)                    # biased (unbiased=False)
    stdev = jnp.sqrt(var + EPS)
    xn = (x - mean) / stdev
    xn = xn * aff_w[0] + aff_b[0]                              # [B, S, C]
    y = jnp.einsum("ps,bsc->bpc", w, xn) + lin_bias            # [B, P, C]
    y = (y - aff_b[0]) / (aff_w[0] + EPS * EPS)
    y = y * stdev + mean
    return y


if __name__ == "__main__":
    # small shapes consistent with the module: configs.seq_len=16,
    # configs.pred_len=8, configs.enc_in=4, revin=True, batch=2
    B, seq_len, pred_len, c_in = 2, 16, 8, 4

    key = jax.random.PRNGKey(0)
    kx, kw, kb, kaw, kab = jax.random.split(key, 5)

    x = jax.random.normal(kx, (B, seq_len, c_in), dtype=jnp.float32)

    # deterministic parameter init (PyTorch Linear-like scale)
    bound = 1.0 / (seq_len ** 0.5)
    w = jax.random.uniform(kw, (pred_len, seq_len), jnp.float32, -bound, bound)
    lin_bias = jax.random.uniform(kb, (pred_len, 1), jnp.float32, -bound, bound)
    # RevIN affine params: perturbed away from (1, 0) init so the algebraic
    # affine folding is actually exercised by the correctness check.
    aff_w = 1.0 + 0.1 * jax.random.normal(kaw, (1, c_in), jnp.float32)
    aff_b = 0.1 * jax.random.normal(kab, (1, c_in), jnp.float32)

    out = mfenet_forward(x, w, lin_bias, aff_w, aff_b)
    out = jax.block_until_ready(out)

    ref = reference_forward(x, w, lin_bias, aff_w, aff_b)
    assert out.shape == (B, pred_len, c_in)
    assert jnp.allclose(out, ref, atol=1e-4, rtol=1e-4)

    print("KERNEL_OK")
</pallas_src>

<mosaic_0001>
module attributes {stable_mosaic.version = 11 : i64} {
  func.func @kernel(%arg0: i32, %arg1: memref<2x16x4xf32, #tpu.memory_space<vmem>>, %arg2: memref<8x16xf32, #tpu.memory_space<vmem>>, %arg3: memref<1x4xf32, #tpu.memory_space<vmem>>, %arg4: memref<1x4xf32, #tpu.memory_space<vmem>>, %arg5: memref<8x4xf32, #tpu.memory_space<vmem>>, %arg6: memref<2x8x4xf32, #tpu.memory_space<vmem>>) attributes {dimension_semantics = [#tpu.dimension_semantics<parallel>], iteration_bounds = array<i64: 1>, scalar_prefetch = 0 : i64, scratch_operands = 0 : i64, tpu.core_type = #tpu.core_type<tc>, window_params = [{transform_indices = @transform_0, window_bounds = array<i64: 2, 16, 4>}, {pipeline_mode = #tpu.pipeline_mode<synchronous>, transform_indices = @transform_1, window_bounds = array<i64: 8, 16>}, {pipeline_mode = #tpu.pipeline_mode<synchronous>, transform_indices = @transform_2, window_bounds = array<i64: 1, 4>}, {pipeline_mode = #tpu.pipeline_mode<synchronous>, transform_indices = @transform_3, window_bounds = array<i64: 1, 4>}, {pipeline_mode = #tpu.pipeline_mode<synchronous>, transform_indices = @transform_4, window_bounds = array<i64: 8, 4>}, {transform_indices = @transform_5, window_bounds = array<i64: 2, 8, 4>}]} {
    %c0 = arith.constant 0 : index
    %c0_0 = arith.constant 0 : index
    %c0_1 = arith.constant 0 : index
    %0 = vector.load %arg1[%c0, %c0_0, %c0_1] : memref<2x16x4xf32, #tpu.memory_space<vmem>>, vector<2x16x4xf32>
    %cst = arith.constant dense<0.000000e+00> : vector<2x4xf32>
    %1 = vector.multi_reduction <add>, %0, %cst [1] : vector<2x16x4xf32> to vector<2x4xf32>
    %2 = vector.shape_cast %1 : vector<2x4xf32> to vector<2x1x4xf32>
    %cst_2 = arith.constant 1.600000e+01 : f32
    %3 = vector.broadcast %cst_2 : f32 to vector<2x1x4xf32>
    %4 = arith.divf %2, %3 : vector<2x1x4xf32>
    %5 = vector.broadcast %4 : vector<2x1x4xf32> to vector<2x16x4xf32>
    %6 = arith.subf %0, %5 : vector<2x16x4xf32>
    %7 = arith.mulf %6, %6 : vector<2x16x4xf32>
    %cst_3 = arith.constant dense<0.000000e+00> : vector<2x4xf32>
    %8 = vector.multi_reduction <add>, %7, %cst_3 [1] : vector<2x16x4xf32> to vector<2x4xf32>
    %9 = vector.shape_cast %8 : vector<2x4xf32> to vector<2x1x4xf32>
    %cst_4 = arith.constant 1.600000e+01 : f32
    %10 = vector.broadcast %cst_4 : f32 to vector<2x1x4xf32>
    %11 = arith.divf %9, %10 : vector<2x1x4xf32>
    %cst_5 = arith.constant 9.99999974E-6 : f32
    %12 = vector.broadcast %cst_5 : f32 to vector<2x1x4xf32>
    %13 = arith.addf %11, %12 : vector<2x1x4xf32>
    %14 = math.rsqrt %13 : vector<2x1x4xf32>
    %cst_6 = arith.constant 9.99999974E-6 : f32
    %15 = vector.broadcast %cst_6 : f32 to vector<2x1x4xf32>
    %16 = arith.addf %11, %15 : vector<2x1x4xf32>
    %17 = arith.mulf %16, %14 : vector<2x1x4xf32>
    %c0_7 = arith.constant 0 : index
    %c0_8 = arith.constant 0 : index
    %18 = vector.load %arg3[%c0_7, %c0_8] : memref<1x4xf32, #tpu.memory_space<vmem>>, vector<1x4xf32>
    %19 = vector.shape_cast %18 : vector<1x4xf32> to vector<1x1x4xf32>
    %20 = vector.broadcast %19 : vector<1x1x4xf32> to vector<2x1x4xf32>
    %21 = arith.mulf %14, %20 : vector<2x1x4xf32>
    %22 = vector.broadcast %21 : vector<2x1x4xf32> to vector<2x16x4xf32>
    %23 = arith.mulf %6, %22 : vector<2x16x4xf32>
    %c0_9 = arith.constant 0 : index
    %c0_10 = arith.constant 0 : index
    %24 = vector.load %arg4[%c0_9, %c0_10] : memref<1x4xf32, #tpu.memory_space<vmem>>, vector<1x4xf32>
    %25 = vector.shape_cast %24 : vector<1x4xf32> to vector<1x1x4xf32>
    %26 = vector.broadcast %25 : vector<1x1x4xf32> to vector<2x1x4xf32>
    %27 = arith.mulf %17, %26 : vector<2x1x4xf32>
    %c0_11 = arith.constant 0 : index
    %c0_12 = arith.constant 0 : index
    %28 = vector.load %arg2[%c0_11, %c0_12] : memref<8x16xf32, #tpu.memory_space<vmem>>, vector<8x16xf32>
    %c0_13 = arith.constant 0 : index
    %c0_14 = arith.constant 0 : index
    %29 = vector.load %arg5[%c0_13, %c0_14] : memref<8x4xf32, #tpu.memory_space<vmem>>, vector<8x4xf32>
    %30 = vector.extract_strided_slice %23 {offsets = [0, 0, 0], sizes = [1, 16, 4], strides = [1, 1, 1]} : vector<2x16x4xf32> to vector<1x16x4xf32>
    %31 = vector.shape_cast %30 : vector<1x16x4xf32> to vector<16x4xf32>
    %cst_15 = arith.constant dense<0.000000e+00> : vector<8x4xf32>
    %32 = tpu.matmul %28, %31, %cst_15 {dimension_numbers = #tpu.dot_dimension_numbers<[1], [0], [0], [1], [0, 0, 1, 1], [], []>} : vector<8x16xf32>, vector<16x4xf32>, vector<8x4xf32> -> vector<8x4xf32>
    %33 = arith.addf %32, %29 : vector<8x4xf32>
    %34 = vector.extract_strided_slice %27 {offsets = [0, 0, 0], sizes = [1, 1, 4], strides = [1, 1, 1]} : vector<2x1x4xf32> to vector<1x1x4xf32>
    %35 = vector.shape_cast %34 : vector<1x1x4xf32> to vector<1x4xf32>
    %36 = vector.broadcast %35 : vector<1x4xf32> to vector<8x4xf32>
    %37 = arith.mulf %33, %36 : vector<8x4xf32>
    %38 = vector.extract_strided_slice %4 {offsets = [0, 0, 0], sizes = [1, 1, 4], strides = [1, 1, 1]} : vector<2x1x4xf32> to vector<1x1x4xf32>
    %39 = vector.shape_cast %38 : vector<1x1x4xf32> to vector<1x4xf32>
    %40 = vector.broadcast %39 : vector<1x4xf32> to vector<8x4xf32>
    %41 = arith.addf %37, %40 : vector<8x4xf32>
    %c0_16 = arith.constant 0 : index
    %c0_17 = arith.constant 0 : index
    %c0_18 = arith.constant 0 : index
    %42 = vector.load %arg6[%c0_16, %c0_17, %c0_18] : memref<2x8x4xf32, #tpu.memory_space<vmem>>, vector<1x8x4xf32>
    %43 = vector.shape_cast %42 : vector<1x8x4xf32> to vector<8x4xf32>
    %44 = vector.shape_cast %41 : vector<8x4xf32> to vector<1x8x4xf32>
    tpu.vector_store %arg6[%c0_16, %c0_17, %c0_18], %44 {strides = array<i32>} : memref<2x8x4xf32, #tpu.memory_space<vmem>>, vector<1x8x4xf32>,
    %45 = vector.extract_strided_slice %23 {offsets = [1, 0, 0], sizes = [1, 16, 4], strides = [1, 1, 1]} : vector<2x16x4xf32> to vector<1x16x4xf32>
    %46 = vector.shape_cast %45 : vector<1x16x4xf32> to vector<16x4xf32>
    %cst_19 = arith.constant dense<0.000000e+00> : vector<8x4xf32>
    %47 = tpu.matmul %28, %46, %cst_19 {dimension_numbers = #tpu.dot_dimension_numbers<[1], [0], [0], [1], [0, 0, 1, 1], [], []>} : vector<8x16xf32>, vector<16x4xf32>, vector<8x4xf32> -> vector<8x4xf32>
    %48 = arith.addf %47, %29 : vector<8x4xf32>
    %49 = vector.extract_strided_slice %27 {offsets = [1, 0, 0], sizes = [1, 1, 4], strides = [1, 1, 1]} : vector<2x1x4xf32> to vector<1x1x4xf32>
    %50 = vector.shape_cast %49 : vector<1x1x4xf32> to vector<1x4xf32>
    %51 = vector.broadcast %50 : vector<1x4xf32> to vector<8x4xf32>
    %52 = arith.mulf %48, %51 : vector<8x4xf32>
    %53 = vector.extract_strided_slice %4 {offsets = [1, 0, 0], sizes = [1, 1, 4], strides = [1, 1, 1]} : vector<2x1x4xf32> to vector<1x1x4xf32>
    %54 = vector.shape_cast %53 : vector<1x1x4xf32> to vector<1x4xf32>
    %55 = vector.broadcast %54 : vector<1x4xf32> to vector<8x4xf32>
    %56 = arith.addf %52, %55 : vector<8x4xf32>
    %c1 = arith.constant 1 : index
    %c0_20 = arith.constant 0 : index
    %c0_21 = arith.constant 0 : index
    %57 = vector.load %arg6[%c1, %c0_20, %c0_21] : memref<2x8x4xf32, #tpu.memory_space<vmem>>, vector<1x8x4xf32>
    %58 = vector.shape_cast %57 : vector<1x8x4xf32> to vector<8x4xf32>
    %59 = vector.shape_cast %56 : vector<8x4xf32> to vector<1x8x4xf32>
    tpu.vector_store %arg6[%c1, %c0_20, %c0_21], %59 {strides = array<i32>} : memref<2x8x4xf32, #tpu.memory_space<vmem>>, vector<1x8x4xf32>,
    return
  }
  func.func @transform_0(%arg0: i32) -> (i32, i32, i32) {
    %c0_i32 = arith.constant 0 : i32
    %c0_i32_0 = arith.constant 0 : i32
    %c0_i32_1 = arith.constant 0 : i32
    return %arg0, %c0_i32, %c0_i32_0 : i32, i32, i32
  }
  func.func @transform_1(%arg0: i32) -> (i32, i32) {
    %c0_i32 = arith.constant 0 : i32
    %c0_i32_0 = arith.constant 0 : i32
    %c0_i32_1 = arith.constant 0 : i32
    return %c0_i32, %c0_i32_0 : i32, i32
  }
  func.func @transform_2(%arg0: i32) -> (i32, i32) {
    %c0_i32 = arith.constant 0 : i32
    %c0_i32_0 = arith.constant 0 : i32
    %c0_i32_1 = arith.constant 0 : i32
    return %c0_i32, %c0_i32_0 : i32, i32
  }
  func.func @transform_3(%arg0: i32) -> (i32, i32) {
    %c0_i32 = arith.constant 0 : i32
    %c0_i32_0 = arith.constant 0 : i32
    %c0_i32_1 = arith.constant 0 : i32
    return %c0_i32, %c0_i32_0 : i32, i32
  }
  func.func @transform_4(%arg0: i32) -> (i32, i32) {
    %c0_i32 = arith.constant 0 : i32
    %c0_i32_0 = arith.constant 0 : i32
    %c0_i32_1 = arith.constant 0 : i32
    return %c0_i32, %c0_i32_0 : i32, i32
  }
  func.func @transform_5(%arg0: i32) -> (i32, i32, i32) {
    %c0_i32 = arith.constant 0 : i32
    %c0_i32_0 = arith.constant 0 : i32
    %c0_i32_1 = arith.constant 0 : i32
    return %arg0, %c0_i32, %c0_i32_0 : i32, i32, i32
  }
}

</mosaic_0001>

<llo_original>
// kernel: tpu_custom_call.1
$region0: #{tpu_custom_call.1}
  #allocation0 [shape = 'u32[]', space=smem, size = 0x4, offset = 0x4, fixed_abs, tag = 'smem constant byte address 0x4 - core index']
  #allocation1 [shape = 'u32[72,128]{1,0:T(1,128)}', space=vmem, size = 0x9000, scoped, tag = 'internal scratch']
  %s0 = inlined_call_operand.vmem [shape: f32[2,16,4], index: 0, kind: input, shape index: {}]
  %s1 = inlined_call_operand.vmem [shape: f32[8,16], index: 1, kind: input, shape index: {}]
  %s2 = inlined_call_operand.vmem [shape: f32[1,4], index: 2, kind: input, shape index: {}]
  %s3 = inlined_call_operand.vmem [shape: f32[1,4], index: 3, kind: input, shape index: {}]
  %s4 = inlined_call_operand.vmem [shape: f32[8,4], index: 4, kind: input, shape index: {}]
  %s5 = inlined_call_operand.vmem [shape: f32[2,8,4], index: 5, kind: output, shape index: {}]
  %s6 = sld [smem:[#allocation0]]
  $region30: #{tpu_custom_call.1} parent=0
    _
  %s8 = ssub.s32 1, %s6
  %s9 = scalar_select 0, %s8, %s6
  // Predicated region
  $region2: #{tpu_custom_call.1} parent=0 // pred_check
    _
  $region3: #{tpu_custom_call.1} parent=0 // pred_check_branch
    %11 = sbr.rel (0) target = $region5
  $region4: #{tpu_custom_call.1} parent=0 // pred_region
    _
  $region5: #{tpu_custom_call.1} parent=0 // pred_fallthru
    _
  // Predicated region
  $region6: #{tpu_custom_call.1} parent=0 // pred_check
    _
  $region7: #{tpu_custom_call.1} parent=0 // pred_check_branch
    %13 = sbr.rel (0) target = $region9
  $region8: #{tpu_custom_call.1} parent=0 // pred_region
    _
  $region9: #{tpu_custom_call.1} parent=0 // pred_fallthru
    _
  // Predicated region
  $region10: #{tpu_custom_call.1} parent=0 // pred_check
    _
  $region11: #{tpu_custom_call.1} parent=0 // pred_check_branch
    %15 = sbr.rel (0) target = $region13
  $region12: #{tpu_custom_call.1} parent=0 // pred_region
    _
  $region13: #{tpu_custom_call.1} parent=0 // pred_fallthru
    _
  // Predicated region
  $region14: #{tpu_custom_call.1} parent=0 // pred_check
    _
  $region15: #{tpu_custom_call.1} parent=0 // pred_check_branch
    %17 = sbr.rel (0) target = $region17
  $region16: #{tpu_custom_call.1} parent=0 // pred_region
    _
  $region17: #{tpu_custom_call.1} parent=0 // pred_fallthru
    _
  // Predicated region
  $region18: #{tpu_custom_call.1} parent=0 // pred_check
    _
  $region19: #{tpu_custom_call.1} parent=0 // pred_check_branch
    %19 = sbr.rel (0) target = $region21
  $region20: #{tpu_custom_call.1} parent=0 // pred_region
    _
  $region21: #{tpu_custom_call.1} parent=0 // pred_fallthru
    _
  %v20 = vld [vmem:[%s0] sm:$0xff]
  %v21 = vld [vmem:[%s0 + $0x8] sm:$0xff]
  %v22 = vld [vmem:[%s0 + $0x10] sm:$0xff]
  %v23 = vld [vmem:[%s0 + $0x18] sm:$0xff]
  %vm24 = vcmask 31744
  %v25 = vsel %vm24, %v20, 0.0
  %v26 = vsel %vm24, %v21, 0.0
  %v27 = vadd.f32 %v25, %v26
  %v28 = vrot.slane %v27, 4
  %v29 = vadd.f32 %v27, %v28
  %v30 = vrot.slane %v29, 2
  %v31 = vadd.f32 %v29, %v30
  %v32 = vrot.slane %v31, 1
  %v33 = vadd.f32 %v31, %v32
  %v34 = vsel %vm24, %v22, 0.0
  %v35 = vsel %vm24, %v23, 0.0
  %v36 = vadd.f32 %v34, %v35
  %v37 = vrot.slane %v36, 4
  %v38 = vadd.f32 %v36, %v37
  %v39 = vrot.slane %v38, 2
  %v40 = vadd.f32 %v38, %v39
  %v41 = vrot.slane %v40, 1
  %v42 = vadd.f32 %v40, %v41
  %v43 = vrcp.pop 16.0
  %v44 = vmul.f32 16.0, %v43
  %v45 = vsub.f32 1.0, %v44
  %v46 = vmul.f32 %v43, %v45
  %v47 = vadd.f32 %v43, %v46
  %vm48 = vweird.f32 %v43
  %v49 = vsel %vm48, %v43, %v47
  %v50 = vmul.f32 %v33, %v49
  %v51 = vmul.f32 %v42, %v49
  %v52 = vsub.f32 %v20, %v50
  %v53 = vsub.f32 %v21, %v50
  %v54 = vsub.f32 %v22, %v51
  %v55 = vsub.f32 %v23, %v51
  %v56 = vmul.f32 %v52, %v52
  %v57 = vmul.f32 %v53, %v53
  %v58 = vmul.f32 %v54, %v54
  %v59 = vmul.f32 %v55, %v55
  %v60 = vsel %vm24, %v56, 0.0
  %v61 = vsel %vm24, %v57, 0.0
  %v62 = vadd.f32 %v60, %v61
  %v63 = vrot.slane %v62, 4
  %v64 = vadd.f32 %v62, %v63
  %v65 = vrot.slane %v64, 2
  %v66 = vadd.f32 %v64, %v65
  %v67 = vrot.slane %v66, 1
  %v68 = vadd.f32 %v66, %v67
  %v69 = vsel %vm24, %v58, 0.0
  %v70 = vsel %vm24, %v59, 0.0
  %v71 = vadd.f32 %v69, %v70
  %v72 = vrot.slane %v71, 4
  %v73 = vadd.f32 %v71, %v72
  %v74 = vrot.slane %v73, 2
  %v75 = vadd.f32 %v73, %v74
  %v76 = vrot.slane %v75, 1
  %v77 = vadd.f32 %v75, %v76
  %v78 = vmul.f32 %v68, %v49
  %v79 = vmul.f32 %v77, %v49
  %v80 = vadd.f32 %v78, 1e-05
  %v81 = vadd.f32 %v79, 1e-05
  %v82 = vrsqrt.pop %v80
  %v83 = vmul.f32 %v82, %v80
  %v84 = vmul.f32 %v83, %v82
  %v85 = vmul.f32 0.5, %v84
  %v86 = vsub.f32 1.5, %v85
  %v87 = vmul.f32 %v82, %v86
  %vm88 = vweird.f32 %v80
  %vm89 = vweird.f32 %v82
  %vm90 = vmor %vm88, %vm89
  %v91 = vsel %vm90, %v82, %v87
  %v92 = vrsqrt.pop %v81
  %v93 = vmul.f32 %v92, %v81
  %v94 = vmul.f32 %v93, %v92
  %v95 = vmul.f32 0.5, %v94
  %v96 = vsub.f32 1.5, %v95
  %v97 = vmul.f32 %v92, %v96
  %vm98 = vweird.f32 %v81
  %vm99 = vweird.f32 %v92
  %vm100 = vmor %vm98, %vm99
  %v101 = vsel %vm100, %v92, %v97
  %v102 = vmul.f32 %v80, %v91
  %v103 = vmul.f32 %v81, %v101
  %v104 = vld [vmem:[%s2] sm:$0x1]
  %v105 = vmul.f32 %v91, %v104
  %v106 = vmul.f32 %v101, %v104
  %v107 = vperm.slane %v105, 0
  %v108 = vperm.slane %v106, 0
  %v109 = vmul.f32 %v52, %v107
  %v110 = vmul.f32 %v53, %v107
  %v111 = vmul.f32 %v54, %v108
  %v112 = vmul.f32 %v55, %v108
  %v113 = vld [vmem:[%s3] sm:$0x1]
  %v114 = vmul.f32 %v102, %v113
  %v115 = vmul.f32 %v103, %v113
  %v116 = vld [vmem:[%s1] sm:$0xff]
  %v117 = vld [vmem:[%s4] sm:$0xff]
  %vm118 = vcmask 130048
  %v120 = vsel %vm118, %v116, 0
  %122 = vmatpush.msra.mxu0 0.0
  %123 = vmatpush.msra.mxu0 0.0
  %124 = vmatpush.msra.mxu0 0.0
  %125 = vmatpush.msra.mxu0 0.0
  %126 = vmatpush.msra.mxu0 0.0
  %127 = vmatpush.msra.mxu0 0.0
  %128 = vmatpush.msra.mxu0 0.0
  %129 = vmatpush.msra.mxu0 0.0
  %130 = vmatpush.msra.mxu0 0.0
  %131 = vmatpush.msra.mxu0 0.0
  %132 = vmatpush.msra.mxu0 0.0
  %133 = vmatpush.msra.mxu0 0.0
  %134 = vmatpush.msra.mxu0 0.0
  %135 = vmatpush.msra.mxu0 0.0
  %136 = vmatpush.msra.mxu0 %v110
  %137 = vmatpush.msra.mxu0 %v109
  %138 = vmatmul.f32.gmra.mxu0 %v120
  %v139 = vpop.f32.mrf.mxu0
  %v140 = vadd.f32 %v117, %v139
  %141 = vdwg.mxu0
  %v142 = vperm.slane %v114, 0
  %v143 = vmul.f32 %v140, %v142
  %v144 = vadd.f32 %v143, %v50
  %145 = vst.msk [vmem:[%s5] sm:$0xff] %vm24, %v144
  %146 = vmatpush.msra.mxu0 0.0
  %147 = vmatpush.msra.mxu0 0.0
  %148 = vmatpush.msra.mxu0 0.0
  %149 = vmatpush.msra.mxu0 0.0
  %150 = vmatpush.msra.mxu0 0.0
  %151 = vmatpush.msra.mxu0 0.0
  %152 = vmatpush.msra.mxu0 0.0
  %153 = vmatpush.msra.mxu0 0.0
  %154 = vmatpush.msra.mxu0 0.0
  %155 = vmatpush.msra.mxu0 0.0
  %156 = vmatpush.msra.mxu0 0.0
  %157 = vmatpush.msra.mxu0 0.0
  %158 = vmatpush.msra.mxu0 0.0
  %159 = vmatpush.msra.mxu0 0.0
  %160 = vmatpush.msra.mxu0 %v112
  %161 = vmatpush.msra.mxu0 %v111
  %162 = vmatmul.f32.gmra.mxu0 %v120
  %v163 = vpop.f32.mrf.mxu0
  %v164 = vadd.f32 %v117, %v163
  %165 = vdwg.mxu0
  %v166 = vperm.slane %v115, 0
  %v167 = vmul.f32 %v164, %v166
  %v168 = vadd.f32 %v167, %v51
  %s169 = scalar_lea.vmem %s5, 8
  %170 = vst.msk [vmem:[%s169] sm:$0xff] %vm24, %v168
  // Predicated region
  $region22: #{tpu_custom_call.1} parent=0 // pred_check
    _
  $region23: #{tpu_custom_call.1} parent=0 // pred_check_branch
    %172 = sbr.rel (0) target = $region25
  $region24: #{tpu_custom_call.1} parent=0 // pred_region
    _
  $region25: #{tpu_custom_call.1} parent=0 // pred_fallthru
    _
  // Predicated region
  $region26: #{tpu_custom_call.1} parent=0 // pred_check
    _
  $region27: #{tpu_custom_call.1} parent=0 // pred_check_branch
    %174 = sbr.rel (0) target = $region29
  $region28: #{tpu_custom_call.1} parent=0 // pred_region
    _
  $region29: #{tpu_custom_call.1} parent=0 // pred_fallthru
    _

</llo_original>
